<compile_context>
chip_gen: v7x
topology: tpu7x:2x2x1
jax: 0.10.0
libtpu: 0.0.40
codegen_flags: <defaults>
</compile_context>

<pallas_src>
import jax
import jax.numpy as jnp
from jax.experimental import pallas as pl
from jax.experimental.pallas import tpu as pltpu


def _round_up(a, b):
    return ((a + b - 1) // b) * b


def _patch_embed_kernel(x_ref, w_ref, b_ref, o_ref):
    # x_ref: (TM, Kp)   packed patches (Kp = P*G, lane-dense)
    # w_ref: (Kp, Ep)   block-diagonal projection weight (VMEM-resident across grid)
    # b_ref: (1, Ep)    bias (f32), tiled G times
    # o_ref: (TM, Ep)   packed output embeddings (lane-dense store)
    acc = jnp.dot(x_ref[...], w_ref[...], preferred_element_type=jnp.float32)
    o_ref[...] = (acc + b_ref[...]).astype(o_ref.dtype)


def patch_embedding(x, weight, bias, patch_size, *, compute_dtype=None, tm_packed=1024):
    """x: (B, L); weight: (E, 1, P); bias: (E,).  Returns (B, L // P, E).

    compute_dtype: optionally cast x / weight (e.g. jnp.bfloat16) to halve HBM
    traffic; accumulation and bias add stay in f32, output stays in x.dtype.
    tm_packed: rows-of-packed-patches per grid step (1024 packed rows == 16384
    patches ~= 2.5 MB of traffic per step for f32).
    """
    B, L = x.shape
    E = weight.shape[0]
    P = patch_size
    assert L % P == 0, "sequence length must be divisible by patch_size"
    N = L // P
    M = B * N

    out_dtype = x.dtype
    if compute_dtype is not None:
        x = x.astype(compute_dtype)
        weight = weight.astype(compute_dtype)

    # Pack G patches per kernel row so input (P*G) and output (E*G) last dims are
    # lane-dense multiples of 128.  Fallback G=1 keeps the plain formulation.
    G = (128 // P) if (P <= 128 and 128 % P == 0) else 1
    Kp, Ep = P * G, E * G

    # --- wrapper-side glue (plain JAX, row-major byte reinterpretation only) ---
    patches = x.reshape(M, P)                       # (M, P)
    Mg = _round_up(M, G)
    if Mg != M:
        patches = jnp.pad(patches, ((0, Mg - M), (0, 0)))
    Mp = Mg // G
    packed = patches.reshape(Mp, Kp)                # (Mp, Kp)

    w2d = weight.reshape(E, P).T                    # (P, E)
    w_big = jnp.kron(jnp.eye(G, dtype=w2d.dtype), w2d)        # (Kp, Ep), block-diag
    b_big = jnp.tile(bias.astype(jnp.float32), G).reshape(1, Ep)

    # Tile the packed-row axis.  Large tiles amortize the ~0.35 us per-step
    # overhead; 16-row alignment satisfies both f32 (8) and bf16 (16) sublane tiling.
    row_align = 16
    TM = min(tm_packed, _round_up(Mp, row_align))
    Mp_pad = _round_up(Mp, TM)
    if Mp_pad != Mp:
        packed = jnp.pad(packed, ((0, Mp_pad - Mp), (0, 0)))

    grid = (Mp_pad // TM,)
    out_packed = pl.pallas_call(
        _patch_embed_kernel,
        out_shape=jax.ShapeDtypeStruct((Mp_pad, Ep), out_dtype),
        grid_spec=pl.GridSpec(
            grid=grid,
            in_specs=[
                pl.BlockSpec((TM, Kp), lambda i: (i, 0)),   # stream row tiles
                pl.BlockSpec((Kp, Ep), lambda i: (0, 0)),   # weight stays resident
                pl.BlockSpec((1, Ep), lambda i: (0, 0)),    # bias stays resident
            ],
            out_specs=pl.BlockSpec((TM, Ep), lambda i: (i, 0)),
        ),
        compiler_params=pltpu.CompilerParams(
            dimension_semantics=("parallel",)),            # v7x: shard tiles over both TCs
    )(packed, w_big, b_big)

    # Unpack: (Mp, Ep) rows hold G consecutive output rows each (row-major).
    out = out_packed[:Mp].reshape(Mp * G, E)[:M].reshape(B, N, E)
    return out


if __name__ == "__main__":
    # Small shapes consistent with the module: batch=2, L=64, patch_size=8, embed_dim=32
    B, L = 2, 64
    patch_size, embed_dim = 8, 32

    key = jax.random.PRNGKey(0)
    kx, kw, kb = jax.random.split(key, 3)

    x = jax.random.normal(kx, (B, L), dtype=jnp.float32)
    # Conv1d(in_channels=1, out_channels=embed_dim, kernel_size=patch_size) params.
    weight = jax.random.normal(kw, (embed_dim, 1, patch_size), dtype=jnp.float32) * 0.1
    bias = jax.random.normal(kb, (embed_dim,), dtype=jnp.float32) * 0.1

    # Reference (same math as PyTorch Conv1d with stride == kernel_size).
    ref = (x.reshape(B, L // patch_size, patch_size)
           @ weight.reshape(embed_dim, patch_size).T) + bias[None, None, :]

    # f32 path: exact-ish match.
    out = patch_embedding(x, weight, bias, patch_size)
    out = jax.block_until_ready(out)
    assert out.shape == (B, L // patch_size, embed_dim)
    assert jnp.allclose(out, ref, atol=1e-5, rtol=1e-5)

    # bf16 input/weight path (halves HBM traffic on v6e/v7x); f32 accumulate, loose check.
    out_bf16 = patch_embedding(x, weight, bias, patch_size, compute_dtype=jnp.bfloat16)
    out_bf16 = jax.block_until_ready(out_bf16)
    assert out_bf16.shape == ref.shape
    assert jnp.allclose(out_bf16, ref, atol=5e-2, rtol=5e-2)

    print("KERNEL_OK")
</pallas_src>

<mosaic_0001>
module attributes {stable_mosaic.version = 11 : i64} {
  func.func @_patch_embed_kernel(%arg0: i32, %arg1: memref<16x128xf32, #tpu.memory_space<vmem>>, %arg2: memref<128x512xf32, #tpu.memory_space<vmem>>, %arg3: memref<1x512xf32, #tpu.memory_space<vmem>>, %arg4: memref<16x512xf32, #tpu.memory_space<vmem>>) attributes {dimension_semantics = [#tpu.dimension_semantics<parallel>], iteration_bounds = array<i64: 1>, scalar_prefetch = 0 : i64, scratch_operands = 0 : i64, tpu.core_type = #tpu.core_type<tc>, window_params = [{transform_indices = @transform_0, window_bounds = array<i64: 16, 128>}, {pipeline_mode = #tpu.pipeline_mode<synchronous>, transform_indices = @transform_1, window_bounds = array<i64: 128, 512>}, {pipeline_mode = #tpu.pipeline_mode<synchronous>, transform_indices = @transform_2, window_bounds = array<i64: 1, 512>}, {transform_indices = @transform_3, window_bounds = array<i64: 16, 512>}]} {
    %c0 = arith.constant 0 : index
    %c0_0 = arith.constant 0 : index
    %0 = vector.load %arg1[%c0, %c0_0] : memref<16x128xf32, #tpu.memory_space<vmem>>, vector<16x128xf32>
    %c0_1 = arith.constant 0 : index
    %c0_2 = arith.constant 0 : index
    %1 = vector.load %arg2[%c0_1, %c0_2] : memref<128x512xf32, #tpu.memory_space<vmem>>, vector<128x512xf32>
    %cst = arith.constant dense<0.000000e+00> : vector<16x512xf32>
    %2 = tpu.matmul %0, %1, %cst {dimension_numbers = #tpu.dot_dimension_numbers<[1], [0], [0], [1], [0, 0, 1, 1], [], []>} : vector<16x128xf32>, vector<128x512xf32>, vector<16x512xf32> -> vector<16x512xf32>
    %c0_3 = arith.constant 0 : index
    %c0_4 = arith.constant 0 : index
    %3 = vector.load %arg3[%c0_3, %c0_4] : memref<1x512xf32, #tpu.memory_space<vmem>>, vector<1x512xf32>
    %4 = vector.broadcast %3 : vector<1x512xf32> to vector<16x512xf32>
    %5 = arith.addf %2, %4 : vector<16x512xf32>
    %c0_5 = arith.constant 0 : index
    %c0_6 = arith.constant 0 : index
    %6 = vector.load %arg4[%c0_5, %c0_6] : memref<16x512xf32, #tpu.memory_space<vmem>>, vector<16x512xf32>
    tpu.vector_store %arg4[%c0_5, %c0_6], %5 {strides = array<i32>} : memref<16x512xf32, #tpu.memory_space<vmem>>, vector<16x512xf32>,
    return
  }
  func.func @transform_0(%arg0: i32) -> (i32, i32) {
    %c0_i32 = arith.constant 0 : i32
    %c0_i32_0 = arith.constant 0 : i32
    return %arg0, %c0_i32 : i32, i32
  }
  func.func @transform_1(%arg0: i32) -> (i32, i32) {
    %c0_i32 = arith.constant 0 : i32
    %c0_i32_0 = arith.constant 0 : i32
    %c0_i32_1 = arith.constant 0 : i32
    return %c0_i32, %c0_i32_0 : i32, i32
  }
  func.func @transform_2(%arg0: i32) -> (i32, i32) {
    %c0_i32 = arith.constant 0 : i32
    %c0_i32_0 = arith.constant 0 : i32
    %c0_i32_1 = arith.constant 0 : i32
    return %c0_i32, %c0_i32_0 : i32, i32
  }
  func.func @transform_3(%arg0: i32) -> (i32, i32) {
    %c0_i32 = arith.constant 0 : i32
    %c0_i32_0 = arith.constant 0 : i32
    return %arg0, %c0_i32 : i32, i32
  }
}

</mosaic_0001>

<llo_original>
// kernel: tpu_custom_call.1
$region0: #{tpu_custom_call.1}
  #allocation0 [shape = 'u32[]', space=smem, size = 0x4, offset = 0x4, fixed_abs, tag = 'smem constant byte address 0x4 - core index']
  #allocation1 [shape = 'u32[144,128]{1,0:T(1,128)}', space=vmem, size = 0x12000, scoped, tag = 'internal scratch']
  %s0 = inlined_call_operand.hbm [shape: f32[16,128], index: 0, kind: input, shape index: {}]
  %s1 = inlined_call_operand.hbm [shape: f32[128,512], index: 1, kind: input, shape index: {}]
  %s2 = inlined_call_operand.vmem [shape: f32[1,512], index: 2, kind: input, shape index: {}]
  %s3 = inlined_call_operand.hbm [shape: f32[16,512], index: 3, kind: output, shape index: {}]
  %s4 = sld [smem:[#allocation0]]
  $region30: #{tpu_custom_call.1} parent=0
    _
  %s6 = ssub.s32 1, %s4
  %s7 = scalar_select 0, %s6, %s4
  $region1: #{tpu_custom_call.1} parent=0
    #allocation2 [shape = 'u8[8192]{0}', space=vmem, size = 0x2000, scoped, tag = 'input window, operand 0, single buffered']
    #allocation3 [shape = 's32[1]{0}', space=sflag, size = 0x4, scoped, tag = 'scoped memory for tpu_custom_call.1']
    #allocation4 [shape = 's32[1]{0}', space=sflag, size = 0x4, scoped, tag = 'scoped memory for tpu_custom_call.1']
    #allocation5 [shape = 'u8[262144]{0}', space=vmem, size = 0x40000, scoped, tag = 'input window, operand 1, single buffered']
    #allocation6 [shape = 's32[1]{0}', space=sflag, size = 0x4, scoped, tag = 'scoped memory for tpu_custom_call.1']
    #allocation7 [shape = 'u8[32768]{0}', space=vmem, size = 0x8000, scoped, tag = 'output window, operand 0, single buffered']
    %8 = vsyncpa [#allocation3], 0
    %9 = vsyncpa [#allocation6], 0
    %10 = vsyncpa [#allocation4], 0
    // Predicated region
    $region2: #{tpu_custom_call.1} parent=1 // pred_check
      _
    $region3: #{tpu_custom_call.1} parent=1 // pred_check_branch
      %12 = sbr.rel (0) target = $region5
    $region4: #{tpu_custom_call.1} parent=1 // pred_region
      %s14 = ssub.s32 256, 256
      %15 = vsyncadd [#allocation3], %s14
      %s16 = sshll.u32 [#allocation2], 4
      %s17 = int_to_ptr.vmem [resolvable:$true] %s16
      %22 = dma.hbm_to_vmem [thread:$0]  %s0, 256, %s17, [#allocation3], 128, 128, 8
    $region5: #{tpu_custom_call.1} parent=1 // pred_fallthru
      _
    // Predicated region
    $region6: #{tpu_custom_call.1} parent=1 // pred_check
      _
    $region7: #{tpu_custom_call.1} parent=1 // pred_check_branch
      %24 = sbr.rel (0) target = $region9
    $region8: #{tpu_custom_call.1} parent=1 // pred_region
      %s26 = ssub.s32 8192, 8192
      %27 = vsyncadd [#allocation6], %s26
      %s28 = sshll.u32 [#allocation5], 4
      %s29 = int_to_ptr.vmem [resolvable:$true] %s28
      %34 = dma.hbm_to_vmem [thread:$0]  %s1, 8192, %s29, [#allocation6], 512, 512, 32
    $region9: #{tpu_custom_call.1} parent=1 // pred_fallthru
      _
    // Predicated region
    $region10: #{tpu_custom_call.1} parent=1 // pred_check
      _
    $region11: #{tpu_custom_call.1} parent=1 // pred_check_branch
      %36 = sbr.rel (0) target = $region13
    $region12: #{tpu_custom_call.1} parent=1 // pred_region
      _
    $region13: #{tpu_custom_call.1} parent=1 // pred_fallthru
      _
    // Predicated region
    $region14: #{tpu_custom_call.1} parent=1 // pred_check
      _
    $region15: #{tpu_custom_call.1} parent=1 // pred_check_branch
      %38 = sbr.rel (0) target = $region17
    $region16: #{tpu_custom_call.1} parent=1 // pred_region
      %39 = dma.done [#allocation3], 256
    $region17: #{tpu_custom_call.1} parent=1 // pred_fallthru
      _
    // Predicated region
    $region18: #{tpu_custom_call.1} parent=1 // pred_check
      _
    $region19: #{tpu_custom_call.1} parent=1 // pred_check_branch
      %41 = sbr.rel (0) target = $region21
    $region20: #{tpu_custom_call.1} parent=1 // pred_region
      %42 = dma.done [#allocation6], 8192
    $region21: #{tpu_custom_call.1} parent=1 // pred_fallthru
      _
    %v43 = vld [vmem:[#allocation2] sm:$0xff]
    %v44 = vld [vmem:[#allocation2 + $0x8] sm:$0xff]
    %v45 = vld [vmem:[#allocation5] sm:$0xff]
    %v46 = vld [vmem:[#allocation5 + $0x8] sm:$0xff]
    %v47 = vld [vmem:[#allocation5 + $0x10] sm:$0xff]
    %v48 = vld [vmem:[#allocation5 + $0x18] sm:$0xff]
    %v49 = vld [vmem:[#allocation5 + $0x20] sm:$0xff]
    %v50 = vld [vmem:[#allocation5 + $0x28] sm:$0xff]
    %v51 = vld [vmem:[#allocation5 + $0x30] sm:$0xff]
    %v52 = vld [vmem:[#allocation5 + $0x38] sm:$0xff]
    %v53 = vld [vmem:[#allocation5 + $0x40] sm:$0xff]
    %v54 = vld [vmem:[#allocation5 + $0x48] sm:$0xff]
    %v55 = vld [vmem:[#allocation5 + $0x50] sm:$0xff]
    %v56 = vld [vmem:[#allocation5 + $0x58] sm:$0xff]
    %v57 = vld [vmem:[#allocation5 + $0x60] sm:$0xff]
    %v58 = vld [vmem:[#allocation5 + $0x68] sm:$0xff]
    %v59 = vld [vmem:[#allocation5 + $0x70] sm:$0xff]
    %v60 = vld [vmem:[#allocation5 + $0x78] sm:$0xff]
    %v61 = vld [vmem:[#allocation5 + $0x80] sm:$0xff]
    %v62 = vld [vmem:[#allocation5 + $0x88] sm:$0xff]
    %v63 = vld [vmem:[#allocation5 + $0x90] sm:$0xff]
    %v64 = vld [vmem:[#allocation5 + $0x98] sm:$0xff]
    %v65 = vld [vmem:[#allocation5 + $0xa0] sm:$0xff]
    %v66 = vld [vmem:[#allocation5 + $0xa8] sm:$0xff]
    %v67 = vld [vmem:[#allocation5 + $0xb0] sm:$0xff]
    %v68 = vld [vmem:[#allocation5 + $0xb8] sm:$0xff]
    %v69 = vld [vmem:[#allocation5 + $0xc0] sm:$0xff]
    %v70 = vld [vmem:[#allocation5 + $0xc8] sm:$0xff]
    %v71 = vld [vmem:[#allocation5 + $0xd0] sm:$0xff]
    %v72 = vld [vmem:[#allocation5 + $0xd8] sm:$0xff]
    %v73 = vld [vmem:[#allocation5 + $0xe0] sm:$0xff]
    %v74 = vld [vmem:[#allocation5 + $0xe8] sm:$0xff]
    %v75 = vld [vmem:[#allocation5 + $0xf0] sm:$0xff]
    %v76 = vld [vmem:[#allocation5 + $0xf8] sm:$0xff]
    %v77 = vld [vmem:[#allocation5 + $0x100] sm:$0xff]
    %v78 = vld [vmem:[#allocation5 + $0x108] sm:$0xff]
    %v79 = vld [vmem:[#allocation5 + $0x110] sm:$0xff]
    %v80 = vld [vmem:[#allocation5 + $0x118] sm:$0xff]
    %v81 = vld [vmem:[#allocation5 + $0x120] sm:$0xff]
    %v82 = vld [vmem:[#allocation5 + $0x128] sm:$0xff]
    %v83 = vld [vmem:[#allocation5 + $0x130] sm:$0xff]
    %v84 = vld [vmem:[#allocation5 + $0x138] sm:$0xff]
    %v85 = vld [vmem:[#allocation5 + $0x140] sm:$0xff]
    %v86 = vld [vmem:[#allocation5 + $0x148] sm:$0xff]
    %v87 = vld [vmem:[#allocation5 + $0x150] sm:$0xff]
    %v88 = vld [vmem:[#allocation5 + $0x158] sm:$0xff]
    %v89 = vld [vmem:[#allocation5 + $0x160] sm:$0xff]
    %v90 = vld [vmem:[#allocation5 + $0x168] sm:$0xff]
    %v91 = vld [vmem:[#allocation5 + $0x170] sm:$0xff]
    %v92 = vld [vmem:[#allocation5 + $0x178] sm:$0xff]
    %v93 = vld [vmem:[#allocation5 + $0x180] sm:$0xff]
    %v94 = vld [vmem:[#allocation5 + $0x188] sm:$0xff]
    %v95 = vld [vmem:[#allocation5 + $0x190] sm:$0xff]
    %v96 = vld [vmem:[#allocation5 + $0x198] sm:$0xff]
    %v97 = vld [vmem:[#allocation5 + $0x1a0] sm:$0xff]
    %v98 = vld [vmem:[#allocation5 + $0x1a8] sm:$0xff]
    %v99 = vld [vmem:[#allocation5 + $0x1b0] sm:$0xff]
    %v100 = vld [vmem:[#allocation5 + $0x1b8] sm:$0xff]
    %v101 = vld [vmem:[#allocation5 + $0x1c0] sm:$0xff]
    %v102 = vld [vmem:[#allocation5 + $0x1c8] sm:$0xff]
    %v103 = vld [vmem:[#allocation5 + $0x1d0] sm:$0xff]
    %v104 = vld [vmem:[#allocation5 + $0x1d8] sm:$0xff]
    %v105 = vld [vmem:[#allocation5 + $0x1e0] sm:$0xff]
    %v106 = vld [vmem:[#allocation5 + $0x1e8] sm:$0xff]
    %v107 = vld [vmem:[#allocation5 + $0x1f0] sm:$0xff]
    %v108 = vld [vmem:[#allocation5 + $0x1f8] sm:$0xff]
    %v109 = vld [vmem:[%s2] sm:$0xf]
    %v111 = vlaneseq
    %v112 = vshrl.u32 %v111, 7
    %v113 = vsub.s32 0, %v112
    %v114 = vrot.slane %v109, %v113
    %v115 = vlaneseq
    %v116 = vshrl.u32 %v115, 7
    %v117 = vsub.s32 1, %v116
    %v118 = vrot.slane %v109, %v117
    %v119 = vlaneseq
    %v120 = vshrl.u32 %v119, 7
    %v121 = vsub.s32 2, %v120
    %v122 = vrot.slane %v109, %v121
    %v123 = vlaneseq
    %v124 = vshrl.u32 %v123, 7
    %v125 = vsub.s32 3, %v124
    %v126 = vrot.slane %v109, %v125
    %131 = vmatprep.subr.mxu0 %v46
    %132 = vmatpush1.msra.mxu0 %v45
    %133 = vmatprep.subr.mxu0 %v50
    %134 = vmatpush1.msra.mxu0 %v49
    %135 = vmatprep.subr.mxu0 %v54
    %136 = vmatpush1.msra.mxu0 %v53
    %137 = vmatprep.subr.mxu0 %v58
    %138 = vmatpush1.msra.mxu0 %v57
    %139 = vmatprep.subr.mxu0 %v62
    %140 = vmatpush1.msra.mxu0 %v61
    %141 = vmatprep.subr.mxu0 %v66
    %142 = vmatpush1.msra.mxu0 %v65
    %143 = vmatprep.subr.mxu0 %v70
    %144 = vmatpush1.msra.mxu0 %v69
    %145 = vmatprep.subr.mxu0 %v74
    %146 = vmatpush1.msra.mxu0 %v73
    %147 = vmatprep.subr.mxu0 %v78
    %148 = vmatpush1.msra.mxu0 %v77
    %149 = vmatprep.subr.mxu0 %v82
    %150 = vmatpush1.msra.mxu0 %v81
    %151 = vmatprep.subr.mxu0 %v86
    %152 = vmatpush1.msra.mxu0 %v85
    %153 = vmatprep.subr.mxu0 %v90
    %154 = vmatpush1.msra.mxu0 %v89
    %155 = vmatprep.subr.mxu0 %v94
    %156 = vmatpush1.msra.mxu0 %v93
    %157 = vmatprep.subr.mxu0 %v98
    %158 = vmatpush1.msra.mxu0 %v97
    %159 = vmatprep.subr.mxu0 %v102
    %160 = vmatpush1.msra.mxu0 %v101
    %161 = vmatprep.subr.mxu0 %v106
    %162 = vmatpush1.msra.mxu0 %v105
    %163 = vmatprep.subr.mxu0 0.0
    %164 = vmatpush1.msra.mxu0 0.0
    %165 = vmatprep.subr.mxu0 0.0
    %166 = vmatpush1.msra.mxu0 0.0
    %167 = vmatprep.subr.mxu0 0.0
    %168 = vmatpush1.msra.mxu0 0.0
    %169 = vmatprep.subr.mxu0 0.0
    %170 = vmatpush1.msra.mxu0 0.0
    %171 = vmatprep.subr.mxu0 0.0
    %172 = vmatpush1.msra.mxu0 0.0
    %173 = vmatprep.subr.mxu0 0.0
    %174 = vmatpush1.msra.mxu0 0.0
    %175 = vmatprep.subr.mxu0 0.0
    %176 = vmatpush1.msra.mxu0 0.0
    %177 = vmatprep.subr.mxu0 0.0
    %178 = vmatpush1.msra.mxu0 0.0
    %179 = vmatprep.subr.mxu0 0.0
    %180 = vmatpush1.msra.mxu0 0.0
    %181 = vmatprep.subr.mxu0 0.0
    %182 = vmatpush1.msra.mxu0 0.0
    %183 = vmatprep.subr.mxu0 0.0
    %184 = vmatpush1.msra.mxu0 0.0
    %185 = vmatprep.subr.mxu0 0.0
    %186 = vmatpush1.msra.mxu0 0.0
    %187 = vmatprep.subr.mxu0 0.0
    %188 = vmatpush1.msra.mxu0 0.0
    %189 = vmatprep.subr.mxu0 0.0
    %190 = vmatpush1.msra.mxu0 0.0
    %191 = vmatprep.subr.mxu0 0.0
    %192 = vmatpush1.msra.mxu0 0.0
    %193 = vmatprep.subr.mxu0 0.0
    %194 = vmatpush1.msra.mxu0 0.0
    %195 = vmatprep.mubr.f32.mxu0 0.0
    %196 = vmatmul.mubr.f32.gmra.mrb[0].mxu0 %v43
    %v197 = vpop.f32.mrb[0].mxu0
    %v198 = vadd.f32 %v114, %v197
    %v199 = vpop.f32.mrb[0].mxu0
    %v200 = vadd.f32 %v118, %v199
    %201 = vmatprep.mubr.f32.mxu0 0.0
    %202 = vmatmul.mubr.f32.gmra.mrb[0].mxu0 %v44
    %v203 = vpop.f32.mrb[0].mxu0
    %v204 = vadd.f32 %v114, %v203
    %v205 = vpop.f32.mrb[0].mxu0
    %v206 = vadd.f32 %v118, %v205
    %207 = vdwg.mxu0
    %208 = vmatprep.subr.mxu0 %v48
    %209 = vmatpush1.msra.mxu0 %v47
    %210 = vmatprep.subr.mxu0 %v52
    %211 = vmatpush1.msra.mxu0 %v51
    %212 = vmatprep.subr.mxu0 %v56
    %213 = vmatpush1.msra.mxu0 %v55
    %214 = vmatprep.subr.mxu0 %v60
    %215 = vmatpush1.msra.mxu0 %v59
    %216 = vmatprep.subr.mxu0 %v64
    %217 = vmatpush1.msra.mxu0 %v63
    %218 = vmatprep.subr.mxu0 %v68
    %219 = vmatpush1.msra.mxu0 %v67
    %220 = vmatprep.subr.mxu0 %v72
    %221 = vmatpush1.msra.mxu0 %v71
    %222 = vmatprep.subr.mxu0 %v76
    %223 = vmatpush1.msra.mxu0 %v75
    %224 = vmatprep.subr.mxu0 %v80
    %225 = vmatpush1.msra.mxu0 %v79
    %226 = vmatprep.subr.mxu0 %v84
    %227 = vmatpush1.msra.mxu0 %v83
    %228 = vmatprep.subr.mxu0 %v88
    %229 = vmatpush1.msra.mxu0 %v87
    %230 = vmatprep.subr.mxu0 %v92
    %231 = vmatpush1.msra.mxu0 %v91
    %232 = vmatprep.subr.mxu0 %v96
    %233 = vmatpush1.msra.mxu0 %v95
    %234 = vmatprep.subr.mxu0 %v100
    %235 = vmatpush1.msra.mxu0 %v99
    %236 = vmatprep.subr.mxu0 %v104
    %237 = vmatpush1.msra.mxu0 %v103
    %238 = vmatprep.subr.mxu0 %v108
    %239 = vmatpush1.msra.mxu0 %v107
    %240 = vmatprep.subr.mxu0 0.0
    %241 = vmatpush1.msra.mxu0 0.0
    %242 = vmatprep.subr.mxu0 0.0
    %243 = vmatpush1.msra.mxu0 0.0
    %244 = vmatprep.subr.mxu0 0.0
    %245 = vmatpush1.msra.mxu0 0.0
    %246 = vmatprep.subr.mxu0 0.0
    %247 = vmatpush1.msra.mxu0 0.0
    %248 = vmatprep.subr.mxu0 0.0
    %249 = vmatpush1.msra.mxu0 0.0
    %250 = vmatprep.subr.mxu0 0.0
    %251 = vmatpush1.msra.mxu0 0.0
    %252 = vmatprep.subr.mxu0 0.0
    %253 = vmatpush1.msra.mxu0 0.0
    %254 = vmatprep.subr.mxu0 0.0
    %255 = vmatpush1.msra.mxu0 0.0
    %256 = vmatprep.subr.mxu0 0.0
    %257 = vmatpush1.msra.mxu0 0.0
    %258 = vmatprep.subr.mxu0 0.0
    %259 = vmatpush1.msra.mxu0 0.0
    %260 = vmatprep.subr.mxu0 0.0
    %261 = vmatpush1.msra.mxu0 0.0
    %262 = vmatprep.subr.mxu0 0.0
    %263 = vmatpush1.msra.mxu0 0.0
    %264 = vmatprep.subr.mxu0 0.0
    %265 = vmatpush1.msra.mxu0 0.0
    %266 = vmatprep.subr.mxu0 0.0
    %267 = vmatpush1.msra.mxu0 0.0
    %268 = vmatprep.subr.mxu0 0.0
    %269 = vmatpush1.msra.mxu0 0.0
    %270 = vmatprep.subr.mxu0 0.0
    %271 = vmatpush1.msra.mxu0 0.0
    %272 = vmatprep.mubr.f32.mxu0 0.0
    %273 = vmatmul.mubr.f32.gmra.mrb[0].mxu0 %v43
    %v274 = vpop.f32.mrb[0].mxu0
    %v275 = vadd.f32 %v122, %v274
    %v276 = vpop.f32.mrb[0].mxu0
    %v277 = vadd.f32 %v126, %v276
    %278 = vmatprep.mubr.f32.mxu0 0.0
    %279 = vmatmul.mubr.f32.gmra.mrb[0].mxu0 %v44
    %v280 = vpop.f32.mrb[0].mxu0
    %v281 = vadd.f32 %v122, %v280
    %v282 = vpop.f32.mrb[0].mxu0
    %v283 = vadd.f32 %v126, %v282
    %284 = vdwg.mxu0
    %285 = vst [vmem:[#allocation7] sm:$0xff] %v198
    %286 = vst [vmem:[#allocation7 + $0x8] sm:$0xff] %v200
    %287 = vst [vmem:[#allocation7 + $0x10] sm:$0xff] %v275
    %288 = vst [vmem:[#allocation7 + $0x18] sm:$0xff] %v277
    %289 = vst [vmem:[#allocation7 + $0x20] sm:$0xff] %v204
    %290 = vst [vmem:[#allocation7 + $0x28] sm:$0xff] %v206
    %291 = vst [vmem:[#allocation7 + $0x30] sm:$0xff] %v281
    %292 = vst [vmem:[#allocation7 + $0x38] sm:$0xff] %v283
    // Predicated region
    $region22: #{tpu_custom_call.1} parent=1 // pred_check
      _
    $region23: #{tpu_custom_call.1} parent=1 // pred_check_branch
      %294 = sbr.rel (0) target = $region25
    $region24: #{tpu_custom_call.1} parent=1 // pred_region
      %s296 = ssub.s32 1024, 1024
      %297 = vsyncadd [#allocation4], %s296
      %s298 = sshll.u32 [#allocation7], 4
      %s299 = int_to_ptr.vmem [resolvable:$true] %s298
      %304 = dma.vmem_to_hbm [thread:$0]  %s299, 1024, %s3, [#allocation4], 512, 512, 32
    $region25: #{tpu_custom_call.1} parent=1 // pred_fallthru
      _
    // Predicated region
    $region26: #{tpu_custom_call.1} parent=1 // pred_check
      _
    $region27: #{tpu_custom_call.1} parent=1 // pred_check_branch
      %306 = sbr.rel (0) target = $region29
    $region28: #{tpu_custom_call.1} parent=1 // pred_region
      %307 = dma.done [#allocation4], 1024
    $region29: #{tpu_custom_call.1} parent=1 // pred_fallthru
      _
    %308 = vsyncpa [#allocation3], 1
    %309 = vsyncpa [#allocation6], 1
    %310 = vsyncpa [#allocation4], 1

</llo_original>
